<compile_context>
chip_gen: v7x
topology: tpu7x:2x2x1
jax: 0.10.0
libtpu: 0.0.40
codegen_flags: <defaults>
</compile_context>

<pallas_src>
import math

import jax
import jax.numpy as jnp
from jax import lax
from jax.experimental import pallas as pl
from jax.experimental.pallas import tpu as pltpu


# ----------------------------------------------------------------------------
# Positional-encoding helpers (same math as the PyTorch module: cos on even
# columns, sin on odd columns, freqs = min_freq ** (2*(i//2)/d_model)).
# ----------------------------------------------------------------------------
def make_freqs(d_model: int, min_freq: float = 1e-4) -> jnp.ndarray:
    idx = jnp.arange(d_model)
    return (min_freq ** (2.0 * (idx // 2).astype(jnp.float32)
                         / jnp.float32(d_model))).astype(jnp.float32)


def make_pos_enc(d_model: int, maxlen: int, min_freq: float = 1e-4) -> jnp.ndarray:
    position = jnp.arange(maxlen, dtype=jnp.float32)
    freqs = make_freqs(d_model, min_freq)
    pe = position[:, None] * freqs[None, :]
    even = (jnp.arange(d_model) % 2) == 0
    return jnp.where(even[None, :], jnp.cos(pe), jnp.sin(pe)).astype(jnp.float32)


def pack_params(params, *, min_freq: float = 1e-4):
    """One-time packing of grid-invariant constants (hoisted out of the call path).

    Returns:
      w_packed: (2, D, D) f32 = stack(W1.T, W2.T)
      consts:   (8, D)  f32 rows: 0=b1, 1=b2, 2=gamma, 3=beta, 4=freqs,
                                  5=per-lane phase offset (0 even, -pi/2 odd),
                                  6..7 unused (zeros)
    """
    D = params["w1"].shape[0]
    w_packed = jnp.stack([params["w1"].T, params["w2"].T]).astype(jnp.float32)
    lane = jnp.arange(D)
    phase_off = jnp.where((lane % 2) == 0,
                          jnp.float32(0.0),
                          jnp.float32(-math.pi / 2.0)).astype(jnp.float32)
    consts = jnp.stack([
        params["b1"].astype(jnp.float32),
        params["b2"].astype(jnp.float32),
        params["ln_w"].astype(jnp.float32),
        params["ln_b"].astype(jnp.float32),
        make_freqs(D, min_freq),
        phase_off,
        jnp.zeros((D,), jnp.float32),
        jnp.zeros((D,), jnp.float32),
    ])
    return w_packed, consts


def _tensorcores_per_chip() -> int:
    """Best-effort detection of 2-TC chips (v7x). Wrong guess only costs perf."""
    try:
        kind = jax.devices()[0].device_kind.lower()
    except Exception:
        return 1
    return 2 if ("v7" in kind or "7x" in kind) else 1


# ----------------------------------------------------------------------------
# Pallas kernel: one batch tile of the full residual block.
#   inputs : x (TB,D) f32, t (TB,1) i32, W (2,D,D) f32, consts (8,D) f32
# ----------------------------------------------------------------------------
def _residual_block_kernel(x_ref, t_ref, w_ref, c_ref, o_ref):
    x = x_ref[...].astype(jnp.float32)                       # (TB, D)

    # --- positional encoding: single cosine with per-lane phase offset ------
    t_f = t_ref[...].astype(jnp.float32)                     # (TB, 1)
    freqs = c_ref[4:5, :]                                     # (1, D)
    poff = c_ref[5:6, :]                                      # (1, D)
    e = jnp.cos(t_f * freqs + poff)                           # cos(x-pi/2)=sin(x)

    w1t = w_ref[0]                                            # (D, D) = W1.T
    w2t = w_ref[1]                                            # (D, D) = W2.T
    b1 = c_ref[0:1, :]
    b2 = c_ref[1:2, :]
    gamma = c_ref[2:3, :]
    beta = c_ref[3:4, :]

    # lin1(x + emb(t)) -> exact (erf) GELU -> lin2
    h1 = jnp.dot(x + e, w1t, preferred_element_type=jnp.float32) + b1
    a = 0.5 * h1 * (1.0 + lax.erf(h1 * jnp.float32(1.0 / math.sqrt(2.0))))
    h2 = jnp.dot(a, w2t, preferred_element_type=jnp.float32) + b2

    # residual + LayerNorm over last dim (eps = 1e-5, affine) -- row-local
    r = x + h2
    mean = jnp.mean(r, axis=-1, keepdims=True)
    cent = r - mean
    var = jnp.mean(cent * cent, axis=-1, keepdims=True)
    y = cent * lax.rsqrt(var + jnp.float32(1e-5))
    o_ref[...] = (y * gamma + beta).astype(o_ref.dtype)


# ----------------------------------------------------------------------------
# Wrapper
# ----------------------------------------------------------------------------
def discrete_time_residual_block(x, t, w_packed, consts, *,
                                 batch_tile: int = 2048,
                                 num_tensorcores: int | None = None):
    """x: (B, d_model) float32, t: (B,) int -> (B, d_model) float32."""
    B, D = x.shape
    assert D % 128 == 0, "d_model should be a multiple of the 128-lane width"

    if num_tensorcores is None:
        num_tensorcores = _tensorcores_per_chip()

    # --- tile selection ------------------------------------------------------
    # Biggest tile that fits (default 2048 rows), multiple of 8.  Only on
    # 2-TC chips do we force >=2 steps with an even step count for megacore.
    b8 = ((B + 7) // 8) * 8
    tb = max(8, (min(batch_tile, b8) // 8) * 8)
    if num_tensorcores >= 2 and b8 >= 16:
        steps = pl.cdiv(b8, tb)
        if steps % 2 == 1:
            steps += 1
            tb = max(8, ((-(-b8 // steps) + 7) // 8) * 8)

    grid = (pl.cdiv(B, tb),)       # ragged last block handled by Pallas masks
    t2 = t.astype(jnp.int32).reshape(B, 1)

    row_spec = pl.BlockSpec((tb, D), lambda i: (i, 0))
    t_spec = pl.BlockSpec((tb, 1), lambda i: (i, 0))
    w_spec = pl.BlockSpec((2, D, D), lambda i: (0, 0, 0))     # constant block
    c_spec = pl.BlockSpec((8, D), lambda i: (0, 0))           # constant block

    cost = pl.CostEstimate(
        flops=4 * B * D * D,                 # two (B,D)x(D,D) matmuls
        transcendentals=2 * B * D,           # cos + erf
        bytes_accessed=2 * B * D * 4 + 2 * D * D * 4 + 8 * D * 4 + B * 4,
    )

    out = pl.pallas_call(
        _residual_block_kernel,
        out_shape=jax.ShapeDtypeStruct((B, D), x.dtype),
        grid_spec=pltpu.PrefetchScalarGridSpec(
            num_scalar_prefetch=0,
            grid=grid,
            in_specs=[row_spec, t_spec, w_spec, c_spec],
            out_specs=row_spec,
        ),
        compiler_params=pltpu.CompilerParams(
            dimension_semantics=("parallel",),
            vmem_limit_bytes=32 * 1024 * 1024,
        ),
        cost_estimate=cost,
    )(x, t2, w_packed, consts)

    return out


# ----------------------------------------------------------------------------
# Pure-JAX reference (module semantics: table lookup + exact GELU + LayerNorm)
# ----------------------------------------------------------------------------
def reference(x, t, params, pos_enc):
    e = jnp.take(pos_enc, t, axis=0)
    h = x + e
    h1 = h @ params["w1"].T + params["b1"]
    a = jax.nn.gelu(h1, approximate=False)
    h2 = a @ params["w2"].T + params["b2"]
    r = x + h2
    mean = jnp.mean(r, axis=-1, keepdims=True)
    var = jnp.mean((r - mean) ** 2, axis=-1, keepdims=True)
    y = (r - mean) * lax.rsqrt(var + 1e-5)
    return y * params["ln_w"] + params["ln_b"]


if __name__ == "__main__":
    d_model = 128      # module default
    maxlen = 512       # DiscreteTimeResidualBlock default
    B = 16             # small demo batch

    key = jax.random.PRNGKey(0)
    kx, kt, kw1, kb1, kw2, kb2, kg, kbeta = jax.random.split(key, 8)

    bound = 1.0 / math.sqrt(d_model)
    params = {
        "w1": jax.random.uniform(kw1, (d_model, d_model), jnp.float32, -bound, bound),
        "b1": jax.random.uniform(kb1, (d_model,), jnp.float32, -bound, bound),
        "w2": jax.random.uniform(kw2, (d_model, d_model), jnp.float32, -bound, bound),
        "b2": jax.random.uniform(kb2, (d_model,), jnp.float32, -bound, bound),
        "ln_w": 1.0 + 0.1 * jax.random.normal(kg, (d_model,), jnp.float32),
        "ln_b": 0.1 * jax.random.normal(kbeta, (d_model,), jnp.float32),
    }

    # One-time parameter packing (kept out of the per-call path).
    w_packed, consts = pack_params(params)

    pos_enc = make_pos_enc(d_model, maxlen)
    x = jax.random.normal(kx, (B, d_model), jnp.float32)
    t = jax.random.randint(kt, (B,), 0, maxlen, dtype=jnp.int32)

    out = discrete_time_residual_block(x, t, w_packed, consts)
    out = jax.block_until_ready(out)

    ref = reference(x, t, params, pos_enc)
    assert out.shape == (B, d_model)
    # Slightly relaxed tol: in-kernel cos(phase+offset) vs. the host-computed
    # table can differ by a few e-5 from f32 argument reduction at large t;
    # well within forward-pass semantics for maxlen=512.
    err = float(jnp.max(jnp.abs(out - ref)))
    assert jnp.allclose(out, ref, atol=2e-4, rtol=2e-4), err

    print("KERNEL_OK")
</pallas_src>

<mosaic_0001>
module attributes {stable_mosaic.version = 11 : i64} {
  func.func @_residual_block_kernel(%arg0: i32, %arg1: memref<16x128xf32, #tpu.memory_space<vmem>>, %arg2: memref<16x1xi32, #tpu.memory_space<vmem>>, %arg3: memref<2x128x128xf32, #tpu.memory_space<vmem>>, %arg4: memref<8x128xf32, #tpu.memory_space<vmem>>, %arg5: memref<16x128xf32, #tpu.memory_space<vmem>>) attributes {dimension_semantics = [#tpu.dimension_semantics<parallel>], iteration_bounds = array<i64: 1>, scalar_prefetch = 0 : i64, scratch_operands = 0 : i64, tpu.core_type = #tpu.core_type<tc>, window_params = [{transform_indices = @transform_0, window_bounds = array<i64: 16, 128>}, {transform_indices = @transform_1, window_bounds = array<i64: 16, 1>}, {pipeline_mode = #tpu.pipeline_mode<synchronous>, transform_indices = @transform_2, window_bounds = array<i64: 2, 128, 128>}, {pipeline_mode = #tpu.pipeline_mode<synchronous>, transform_indices = @transform_3, window_bounds = array<i64: 8, 128>}, {transform_indices = @transform_4, window_bounds = array<i64: 16, 128>}]} {
    %c0 = arith.constant 0 : index
    %c0_0 = arith.constant 0 : index
    %0 = vector.load %arg1[%c0, %c0_0] : memref<16x128xf32, #tpu.memory_space<vmem>>, vector<16x128xf32>
    %c0_1 = arith.constant 0 : index
    %c0_2 = arith.constant 0 : index
    %1 = vector.load %arg2[%c0_1, %c0_2] : memref<16x1xi32, #tpu.memory_space<vmem>>, vector<16x1xi32>
    %2 = arith.sitofp %1 : vector<16x1xi32> to vector<16x1xf32>
    %c4 = arith.constant 4 : index
    %c0_3 = arith.constant 0 : index
    %3 = vector.load %arg4[%c4, %c0_3] : memref<8x128xf32, #tpu.memory_space<vmem>>, vector<1x128xf32>
    %c5 = arith.constant 5 : index
    %c0_4 = arith.constant 0 : index
    %4 = vector.load %arg4[%c5, %c0_4] : memref<8x128xf32, #tpu.memory_space<vmem>>, vector<1x128xf32>
    %5 = vector.broadcast %2 : vector<16x1xf32> to vector<16x128xf32>
    %6 = vector.broadcast %3 : vector<1x128xf32> to vector<16x128xf32>
    %7 = arith.mulf %5, %6 : vector<16x128xf32>
    %8 = vector.broadcast %4 : vector<1x128xf32> to vector<16x128xf32>
    %9 = arith.addf %7, %8 : vector<16x128xf32>
    %10 = math.cos %9 : vector<16x128xf32>
    %c0_5 = arith.constant 0 : index
    %c0_6 = arith.constant 0 : index
    %c0_7 = arith.constant 0 : index
    %11 = vector.load %arg3[%c0_5, %c0_6, %c0_7] : memref<2x128x128xf32, #tpu.memory_space<vmem>>, vector<1x128x128xf32>
    %12 = vector.shape_cast %11 : vector<1x128x128xf32> to vector<128x128xf32>
    %c1 = arith.constant 1 : index
    %c0_8 = arith.constant 0 : index
    %c0_9 = arith.constant 0 : index
    %13 = vector.load %arg3[%c1, %c0_8, %c0_9] : memref<2x128x128xf32, #tpu.memory_space<vmem>>, vector<1x128x128xf32>
    %14 = vector.shape_cast %13 : vector<1x128x128xf32> to vector<128x128xf32>
    %c0_10 = arith.constant 0 : index
    %c0_11 = arith.constant 0 : index
    %15 = vector.load %arg4[%c0_10, %c0_11] : memref<8x128xf32, #tpu.memory_space<vmem>>, vector<1x128xf32>
    %c1_12 = arith.constant 1 : index
    %c0_13 = arith.constant 0 : index
    %16 = vector.load %arg4[%c1_12, %c0_13] : memref<8x128xf32, #tpu.memory_space<vmem>>, vector<1x128xf32>
    %c2 = arith.constant 2 : index
    %c0_14 = arith.constant 0 : index
    %17 = vector.load %arg4[%c2, %c0_14] : memref<8x128xf32, #tpu.memory_space<vmem>>, vector<1x128xf32>
    %c3 = arith.constant 3 : index
    %c0_15 = arith.constant 0 : index
    %18 = vector.load %arg4[%c3, %c0_15] : memref<8x128xf32, #tpu.memory_space<vmem>>, vector<1x128xf32>
    %19 = arith.addf %0, %10 : vector<16x128xf32>
    %cst = arith.constant dense<0.000000e+00> : vector<16x128xf32>
    %20 = tpu.matmul %19, %12, %cst {dimension_numbers = #tpu.dot_dimension_numbers<[1], [0], [0], [1], [0, 0, 1, 1], [], []>} : vector<16x128xf32>, vector<128x128xf32>, vector<16x128xf32> -> vector<16x128xf32>
    %21 = vector.broadcast %15 : vector<1x128xf32> to vector<16x128xf32>
    %22 = arith.addf %20, %21 : vector<16x128xf32>
    %cst_16 = arith.constant 5.000000e-01 : f32
    %23 = vector.broadcast %cst_16 : f32 to vector<16x128xf32>
    %24 = arith.mulf %23, %22 : vector<16x128xf32>
    %cst_17 = arith.constant 0.707106769 : f32
    %25 = vector.broadcast %cst_17 : f32 to vector<16x128xf32>
    %26 = arith.mulf %22, %25 : vector<16x128xf32>
    %27 = math.erf %26 : vector<16x128xf32>
    %cst_18 = arith.constant 1.000000e+00 : f32
    %28 = vector.broadcast %cst_18 : f32 to vector<16x128xf32>
    %29 = arith.addf %28, %27 : vector<16x128xf32>
    %30 = arith.mulf %24, %29 : vector<16x128xf32>
    %cst_19 = arith.constant dense<0.000000e+00> : vector<16x128xf32>
    %31 = tpu.matmul %30, %14, %cst_19 {dimension_numbers = #tpu.dot_dimension_numbers<[1], [0], [0], [1], [0, 0, 1, 1], [], []>} : vector<16x128xf32>, vector<128x128xf32>, vector<16x128xf32> -> vector<16x128xf32>
    %32 = vector.broadcast %16 : vector<1x128xf32> to vector<16x128xf32>
    %33 = arith.addf %31, %32 : vector<16x128xf32>
    %34 = arith.addf %0, %33 : vector<16x128xf32>
    %cst_20 = arith.constant dense<0.000000e+00> : vector<16xf32>
    %35 = vector.multi_reduction <add>, %34, %cst_20 [1] : vector<16x128xf32> to vector<16xf32>
    %36 = vector.shape_cast %35 : vector<16xf32> to vector<16x1xf32>
    %cst_21 = arith.constant 1.280000e+02 : f32
    %37 = vector.broadcast %cst_21 : f32 to vector<16x1xf32>
    %38 = arith.divf %36, %37 : vector<16x1xf32>
    %39 = vector.broadcast %38 : vector<16x1xf32> to vector<16x128xf32>
    %40 = arith.subf %34, %39 : vector<16x128xf32>
    %41 = arith.mulf %40, %40 : vector<16x128xf32>
    %cst_22 = arith.constant dense<0.000000e+00> : vector<16xf32>
    %42 = vector.multi_reduction <add>, %41, %cst_22 [1] : vector<16x128xf32> to vector<16xf32>
    %43 = vector.shape_cast %42 : vector<16xf32> to vector<16x1xf32>
    %cst_23 = arith.constant 1.280000e+02 : f32
    %44 = vector.broadcast %cst_23 : f32 to vector<16x1xf32>
    %45 = arith.divf %43, %44 : vector<16x1xf32>
    %cst_24 = arith.constant 9.99999974E-6 : f32
    %46 = vector.broadcast %cst_24 : f32 to vector<16x1xf32>
    %47 = arith.addf %45, %46 : vector<16x1xf32>
    %48 = math.rsqrt %47 : vector<16x1xf32>
    %49 = vector.broadcast %48 : vector<16x1xf32> to vector<16x128xf32>
    %50 = arith.mulf %40, %49 : vector<16x128xf32>
    %51 = vector.broadcast %17 : vector<1x128xf32> to vector<16x128xf32>
    %52 = arith.mulf %50, %51 : vector<16x128xf32>
    %53 = vector.broadcast %18 : vector<1x128xf32> to vector<16x128xf32>
    %54 = arith.addf %52, %53 : vector<16x128xf32>
    %c0_25 = arith.constant 0 : index
    %c0_26 = arith.constant 0 : index
    %55 = vector.load %arg5[%c0_25, %c0_26] : memref<16x128xf32, #tpu.memory_space<vmem>>, vector<16x128xf32>
    tpu.vector_store %arg5[%c0_25, %c0_26], %54 {strides = array<i32>} : memref<16x128xf32, #tpu.memory_space<vmem>>, vector<16x128xf32>,
    return
  }
  func.func @transform_0(%arg0: i32) -> (i32, i32) {
    %c0_i32 = arith.constant 0 : i32
    %c0_i32_0 = arith.constant 0 : i32
    return %arg0, %c0_i32 : i32, i32
  }
  func.func @transform_1(%arg0: i32) -> (i32, i32) {
    %c0_i32 = arith.constant 0 : i32
    %c0_i32_0 = arith.constant 0 : i32
    return %arg0, %c0_i32 : i32, i32
  }
  func.func @transform_2(%arg0: i32) -> (i32, i32, i32) {
    %c0_i32 = arith.constant 0 : i32
    %c0_i32_0 = arith.constant 0 : i32
    %c0_i32_1 = arith.constant 0 : i32
    %c0_i32_2 = arith.constant 0 : i32
    return %c0_i32, %c0_i32_0, %c0_i32_1 : i32, i32, i32
  }
  func.func @transform_3(%arg0: i32) -> (i32, i32) {
    %c0_i32 = arith.constant 0 : i32
    %c0_i32_0 = arith.constant 0 : i32
    %c0_i32_1 = arith.constant 0 : i32
    return %c0_i32, %c0_i32_0 : i32, i32
  }
  func.func @transform_4(%arg0: i32) -> (i32, i32) {
    %c0_i32 = arith.constant 0 : i32
    %c0_i32_0 = arith.constant 0 : i32
    return %arg0, %c0_i32 : i32, i32
  }
}

</mosaic_0001>

<llo_original>
// kernel: tpu_custom_call.1
$region0: #{tpu_custom_call.1}
  #allocation0 [shape = 'u32[]', space=smem, size = 0x4, offset = 0x4, fixed_abs, tag = 'smem constant byte address 0x4 - core index']
  #allocation1 [shape = 'u32[144,128]{1,0:T(1,128)}', space=vmem, size = 0x12000, scoped, tag = 'internal scratch']
  %s0 = inlined_call_operand.vmem [shape: f32[16,128], index: 0, kind: input, shape index: {}]
  %s1 = inlined_call_operand.vmem [shape: s32[16,1], index: 1, kind: input, shape index: {}]
  %s2 = inlined_call_operand.hbm [shape: f32[2,128,128], index: 2, kind: input, shape index: {}]
  %s3 = inlined_call_operand.vmem [shape: f32[8,128], index: 3, kind: input, shape index: {}]
  %s4 = inlined_call_operand.hbm [shape: f32[16,128], index: 4, kind: output, shape index: {}]
  %s5 = sld [smem:[#allocation0]]
  $region30: #{tpu_custom_call.1} parent=0
    _
  %s7 = ssub.s32 1, %s5
  %s8 = scalar_select 0, %s7, %s5
  $region1: #{tpu_custom_call.1} parent=0
    #allocation2 [shape = 'u8[131072]{0}', space=vmem, size = 0x20000, scoped, tag = 'input window, operand 2, single buffered']
    #allocation3 [shape = 's32[1]{0}', space=sflag, size = 0x4, scoped, tag = 'scoped memory for tpu_custom_call.1']
    #allocation4 [shape = 's32[1]{0}', space=sflag, size = 0x4, scoped, tag = 'scoped memory for tpu_custom_call.1']
    #allocation5 [shape = 'u8[8192]{0}', space=vmem, size = 0x2000, scoped, tag = 'output window, operand 0, single buffered']
    %9 = vsyncpa [#allocation3], 0
    %10 = vsyncpa [#allocation4], 0
    // Predicated region
    $region2: #{tpu_custom_call.1} parent=1 // pred_check
      _
    $region3: #{tpu_custom_call.1} parent=1 // pred_check_branch
      %12 = sbr.rel (0) target = $region5
    $region4: #{tpu_custom_call.1} parent=1 // pred_region
      _
    $region5: #{tpu_custom_call.1} parent=1 // pred_fallthru
      _
    // Predicated region
    $region6: #{tpu_custom_call.1} parent=1 // pred_check
      _
    $region7: #{tpu_custom_call.1} parent=1 // pred_check_branch
      %14 = sbr.rel (0) target = $region9
    $region8: #{tpu_custom_call.1} parent=1 // pred_region
      _
    $region9: #{tpu_custom_call.1} parent=1 // pred_fallthru
      _
    // Predicated region
    $region10: #{tpu_custom_call.1} parent=1 // pred_check
      _
    $region11: #{tpu_custom_call.1} parent=1 // pred_check_branch
      %16 = sbr.rel (0) target = $region13
    $region12: #{tpu_custom_call.1} parent=1 // pred_region
      %s18 = ssub.s32 4096, 4096
      %19 = vsyncadd [#allocation3], %s18
      %s20 = sshll.u32 [#allocation2], 4
      %s21 = int_to_ptr.vmem [resolvable:$true] %s20
      %26 = dma.hbm_to_vmem [thread:$0]  %s2, 4096, %s21, [#allocation3], 128, 128, 8
    $region13: #{tpu_custom_call.1} parent=1 // pred_fallthru
      _
    // Predicated region
    $region14: #{tpu_custom_call.1} parent=1 // pred_check
      _
    $region15: #{tpu_custom_call.1} parent=1 // pred_check_branch
      %28 = sbr.rel (0) target = $region17
    $region16: #{tpu_custom_call.1} parent=1 // pred_region
      _
    $region17: #{tpu_custom_call.1} parent=1 // pred_fallthru
      _
    // Predicated region
    $region18: #{tpu_custom_call.1} parent=1 // pred_check
      _
    $region19: #{tpu_custom_call.1} parent=1 // pred_check_branch
      %30 = sbr.rel (0) target = $region21
    $region20: #{tpu_custom_call.1} parent=1 // pred_region
      %31 = dma.done [#allocation3], 4096
    $region21: #{tpu_custom_call.1} parent=1 // pred_fallthru
      _
    %v32 = vld [vmem:[%s0] sm:$0xff]
    %v33 = vld [vmem:[%s0 + $0x8] sm:$0xff]
    %v34 = vld [vmem:[%s1] sm:$0xff]
    %v35 = vld [vmem:[%s1 + $0x8] sm:$0xff]
    %v36 = vcvt.s32.f32 %v34
    %v37 = vcvt.s32.f32 %v35
    %v38 = vld [vmem:[%s3 + $0x4] sm:$0x1]
    %v39 = vld [vmem:[%s3 + $0x5] sm:$0x1]
    %41 = vset.pattern.permute.xlu0 0
    %42 = vperm.xlu0 %41, %v36
    %v43 = vpop.permute.xlu0 %42
    %46 = vset.pattern.permute.xlu0 0
    %47 = vperm.xlu0 %46, %v37
    %v48 = vpop.permute.xlu0 %47
    %v50 = vlaneseq
    %v51 = vshrl.u32 %v50, 7
    %v52 = vsub.s32 0, %v51
    %v53 = vrot.slane %v38, %v52
    %v54 = vmul.f32 %v43, %v53
    %v55 = vmul.f32 %v48, %v53
    %v56 = vlaneseq
    %v57 = vshrl.u32 %v56, 7
    %v58 = vsub.s32 0, %v57
    %v59 = vrot.slane %v39, %v58
    %v60 = vadd.f32 %v54, %v59
    %v61 = vadd.f32 %v55, %v59
    %v62 = vand.u32 2147483647, %v60
    %vm63 = vcmp.le.f32.partialorder %v62, 0.7853982
    %vm64 = vcmp.lt.s32.totalorder %v60, 0
    %v65 = vand.u32 %v60, 2139095040
    %v66 = vshrl.u32 %v65, 23
    %v67 = vsub.s32 %v66, 127
    %v68 = vand.u32 2147483647, %v60
    %v69 = vand.u32 %v68, 8388607
    %v70 = vor.u32 %v69, 8388608
    %v71 = vsub.s32 0, %v70
    %v72 = vadd.s32 %v67, 1
    %vm73 = vcmp.gt.s32.totalorder %v72, 0
    %v74 = vsel %vm73, %v72, 0
    %v75 = vshrl.u32 %v74, 5
    %v76 = vand.u32 %v74, 31
    %v77 = vsub.s32 32, %v76
    %v78 = vshrl.u32 683565275, %v77
    %v79 = vshll.u32 683565275, %v76
    %v80 = vshrl.u32 2475754826, %v77
    %v81 = vor.u32 %v79, %v80
    %v82 = vshll.u32 2475754826, %v76
    %v83 = vshrl.u32 2131351028, %v77
    %v84 = vor.u32 %v82, %v83
    %v85 = vshll.u32 2131351028, %v76
    %v86 = vshrl.u32 2102212464, %v77
    %v87 = vor.u32 %v85, %v86
    %v88 = vshll.u32 2102212464, %v76
    %v89 = vshrl.u32 920167782, %v77
    %v90 = vor.u32 %v88, %v89
    %v91 = vshll.u32 920167782, %v76
    %v92 = vshrl.u32 1326507024, %v77
    %v93 = vor.u32 %v91, %v92
    %vm94 = vcmp.lt.s32.totalorder %v75, 1
    %vm95 = vcmp.lt.s32.totalorder %v75, 2
    %vm96 = vcmp.lt.s32.totalorder %v75, 3
    %vm97 = vcmp.lt.s32.totalorder %v75, 4
    %v98 = vsel %vm94, %v78, %v81
    %v99 = vsel %vm97, %v87, 2102212464
    %v100 = vsel %vm96, %v84, %v99
    %v101 = vsel %vm95, %v98, %v100
    %v102 = vsel %vm94, %v81, %v84
    %v103 = vsel %vm97, %v90, 920167782
    %v104 = vsel %vm96, %v87, %v103
    %v105 = vsel %vm95, %v102, %v104
    %v106 = vsel %vm94, %v84, %v87
    %v107 = vsel %vm97, %v93, 1326507024
    %v108 = vsel %vm96, %v90, %v107
    %v109 = vsel %vm95, %v106, %v108
    %v110 = vshll.u32 %v70, 8
    %v111 = vmul.u32.u64.compose %v110, %v109
    %v112 = vextract.low.u32 %v111
    %v113 = vextract.high.u32 %v111
    %v114 = vmul.u32.u64.compose %v110, %v105
    %v115 = vextract.low.u32 %v114
    %v116 = vextract.high.u32 %v114
    %v117 = vmul.u32 %v110, %v101
    %v118 = vadd.s32 %v113, %v115
    %vm119 = vc.u32 %v113, %v115
    %v120 = vadd.s32 %v116, 1
    %v121 = vsel %vm119, %v120, %v116
    %v122 = vadd.s32 %v117, %v121
    %v123 = vadd.s32 %v122, 536870912
    %v124 = vshrl.u32 %v123, 30
    %v125 = vshll.u32 %v124, 30
    %v126 = vsub.s32 %v122, %v125
    %vm127 = vcmp.lt.s32.totalorder %v126, 0
    %v128 = vsub.s32 0, %v126
    %v129 = vsel %vm127, %v128, %v126
    %v130 = vclz %v129
    %v131 = vsub.s32 %v130, 2
    %vm132 = vcmp.gt.s32.totalorder 0, %v131
    %v133 = vsel %vm132, 0, %v131
    %v134 = vsub.s32 32, %v133
    %v135 = vshll.u32 %v126, %v133
    %v136 = vshrl.u32 %v118, %v134
    %v137 = vor.u32 %v135, %v136
    %v138 = vsub.s32 4294967266, %v133
    %v139 = vadd.s32 %v138, 127
    %v140 = vshll.u32 %v139, 23
    %v141 = vor.u32 4788187, %v140
    %v142 = vand.u32 2147483647, %v141
    %v144 = vcvt.s32.f32 %v137
    %v145 = vmul.f32 %v144, %v142
    %v146 = vxor.u32 %v145, 2147483648
    %v147 = vsel %vm64, %v146, %v145
    %v148 = vsub.s32 4, %v124
    %v149 = vsel %vm64, %v148, %v124
    %v150 = vsel %vm63, %v60, %v147
    %v151 = vsel %vm63, 0, %v149
    %v152 = vcosq.f32.pop %v150
    %v153 = vsinq.f32.pop %v150
    %vm154 = vweird.f32 %v60
    %v155 = vand.u32 %v151, 3
    %vm156 = vcmp.lt.s32.totalorder %v155, 2
    %vm157 = vcmp.eq.s32.totalorder %v155, 0
    %v158 = vxor.u32 %v153, 2147483648
    %v159 = vsel %vm157, %v152, %v158
    %vm160 = vcmp.eq.s32.totalorder %v155, 2
    %v161 = vxor.u32 %v152, 2147483648
    %v162 = vsel %vm160, %v161, %v153
    %v163 = vsel %vm156, %v159, %v162
    %v164 = vsel %vm154, nan, %v163
    %v165 = vand.u32 2147483647, %v61
    %vm166 = vcmp.le.f32.partialorder %v165, 0.7853982
    %vm167 = vcmp.lt.s32.totalorder %v61, 0
    %v168 = vand.u32 %v61, 2139095040
    %v169 = vshrl.u32 %v168, 23
    %v170 = vsub.s32 %v169, 127
    %v171 = vand.u32 2147483647, %v61
    %v172 = vand.u32 %v171, 8388607
    %v173 = vor.u32 %v172, 8388608
    %v174 = vsub.s32 0, %v173
    %v175 = vadd.s32 %v170, 1
    %vm176 = vcmp.gt.s32.totalorder %v175, 0
    %v177 = vsel %vm176, %v175, 0
    %v178 = vshrl.u32 %v177, 5
    %v179 = vand.u32 %v177, 31
    %v180 = vsub.s32 32, %v179
    %v181 = vshrl.u32 683565275, %v180
    %v182 = vshll.u32 683565275, %v179
    %v183 = vshrl.u32 2475754826, %v180
    %v184 = vor.u32 %v182, %v183
    %v185 = vshll.u32 2475754826, %v179
    %v186 = vshrl.u32 2131351028, %v180
    %v187 = vor.u32 %v185, %v186
    %v188 = vshll.u32 2131351028, %v179
    %v189 = vshrl.u32 2102212464, %v180
    %v190 = vor.u32 %v188, %v189
    %v191 = vshll.u32 2102212464, %v179
    %v192 = vshrl.u32 920167782, %v180
    %v193 = vor.u32 %v191, %v192
    %v194 = vshll.u32 920167782, %v179
    %v195 = vshrl.u32 1326507024, %v180
    %v196 = vor.u32 %v194, %v195
    %vm197 = vcmp.lt.s32.totalorder %v178, 1
    %vm198 = vcmp.lt.s32.totalorder %v178, 2
    %vm199 = vcmp.lt.s32.totalorder %v178, 3
    %vm200 = vcmp.lt.s32.totalorder %v178, 4
    %v201 = vsel %vm197, %v181, %v184
    %v202 = vsel %vm200, %v190, 2102212464
    %v203 = vsel %vm199, %v187, %v202
    %v204 = vsel %vm198, %v201, %v203
    %v205 = vsel %vm197, %v184, %v187
    %v206 = vsel %vm200, %v193, 920167782
    %v207 = vsel %vm199, %v190, %v206
    %v208 = vsel %vm198, %v205, %v207
    %v209 = vsel %vm197, %v187, %v190
    %v210 = vsel %vm200, %v196, 1326507024
    %v211 = vsel %vm199, %v193, %v210
    %v212 = vsel %vm198, %v209, %v211
    %v213 = vshll.u32 %v173, 8
    %v214 = vmul.u32.u64.compose %v213, %v212
    %v215 = vextract.low.u32 %v214
    %v216 = vextract.high.u32 %v214
    %v217 = vmul.u32.u64.compose %v213, %v208
    %v218 = vextract.low.u32 %v217
    %v219 = vextract.high.u32 %v217
    %v220 = vmul.u32 %v213, %v204
    %v221 = vadd.s32 %v216, %v218
    %vm222 = vc.u32 %v216, %v218
    %v223 = vadd.s32 %v219, 1
    %v224 = vsel %vm222, %v223, %v219
    %v225 = vadd.s32 %v220, %v224
    %v226 = vadd.s32 %v225, 536870912
    %v227 = vshrl.u32 %v226, 30
    %v228 = vshll.u32 %v227, 30
    %v229 = vsub.s32 %v225, %v228
    %vm230 = vcmp.lt.s32.totalorder %v229, 0
    %v231 = vsub.s32 0, %v229
    %v232 = vsel %vm230, %v231, %v229
    %v233 = vclz %v232
    %v234 = vsub.s32 %v233, 2
    %vm235 = vcmp.gt.s32.totalorder 0, %v234
    %v236 = vsel %vm235, 0, %v234
    %v237 = vsub.s32 32, %v236
    %v238 = vshll.u32 %v229, %v236
    %v239 = vshrl.u32 %v221, %v237
    %v240 = vor.u32 %v238, %v239
    %v241 = vsub.s32 4294967266, %v236
    %v242 = vadd.s32 %v241, 127
    %v243 = vshll.u32 %v242, 23
    %v244 = vor.u32 4788187, %v243
    %v245 = vand.u32 2147483647, %v244
    %v247 = vcvt.s32.f32 %v240
    %v248 = vmul.f32 %v247, %v245
    %v249 = vxor.u32 %v248, 2147483648
    %v250 = vsel %vm167, %v249, %v248
    %v251 = vsub.s32 4, %v227
    %v252 = vsel %vm167, %v251, %v227
    %v253 = vsel %vm166, %v61, %v250
    %v254 = vsel %vm166, 0, %v252
    %v255 = vcosq.f32.pop %v253
    %v256 = vsinq.f32.pop %v253
    %vm257 = vweird.f32 %v61
    %v258 = vand.u32 %v254, 3
    %vm259 = vcmp.lt.s32.totalorder %v258, 2
    %vm260 = vcmp.eq.s32.totalorder %v258, 0
    %v261 = vxor.u32 %v256, 2147483648
    %v262 = vsel %vm260, %v255, %v261
    %vm263 = vcmp.eq.s32.totalorder %v258, 2
    %v264 = vxor.u32 %v255, 2147483648
    %v265 = vsel %vm263, %v264, %v256
    %v266 = vsel %vm259, %v262, %v265
    %v267 = vsel %vm257, nan, %v266
    %v268 = vld [vmem:[#allocation2] sm:$0xff]
    %v269 = vld [vmem:[#allocation2 + $0x8] sm:$0xff]
    %v270 = vld [vmem:[#allocation2 + $0x10] sm:$0xff]
    %v271 = vld [vmem:[#allocation2 + $0x18] sm:$0xff]
    %v272 = vld [vmem:[#allocation2 + $0x20] sm:$0xff]
    %v273 = vld [vmem:[#allocation2 + $0x28] sm:$0xff]
    %v274 = vld [vmem:[#allocation2 + $0x30] sm:$0xff]
    %v275 = vld [vmem:[#allocation2 + $0x38] sm:$0xff]
    %v276 = vld [vmem:[#allocation2 + $0x40] sm:$0xff]
    %v277 = vld [vmem:[#allocation2 + $0x48] sm:$0xff]
    %v278 = vld [vmem:[#allocation2 + $0x50] sm:$0xff]
    %v279 = vld [vmem:[#allocation2 + $0x58] sm:$0xff]
    %v280 = vld [vmem:[#allocation2 + $0x60] sm:$0xff]
    %v281 = vld [vmem:[#allocation2 + $0x68] sm:$0xff]
    %v282 = vld [vmem:[#allocation2 + $0x70] sm:$0xff]
    %v283 = vld [vmem:[#allocation2 + $0x78] sm:$0xff]
    %s284 = scalar_lea.vmem [#allocation2], 128
    %v285 = vld [vmem:[%s284] sm:$0xff]
    %v286 = vld [vmem:[%s284 + $0x8] sm:$0xff]
    %v287 = vld [vmem:[%s284 + $0x10] sm:$0xff]
    %v288 = vld [vmem:[%s284 + $0x18] sm:$0xff]
    %v289 = vld [vmem:[%s284 + $0x20] sm:$0xff]
    %v290 = vld [vmem:[%s284 + $0x28] sm:$0xff]
    %v291 = vld [vmem:[%s284 + $0x30] sm:$0xff]
    %v292 = vld [vmem:[%s284 + $0x38] sm:$0xff]
    %v293 = vld [vmem:[%s284 + $0x40] sm:$0xff]
    %v294 = vld [vmem:[%s284 + $0x48] sm:$0xff]
    %v295 = vld [vmem:[%s284 + $0x50] sm:$0xff]
    %v296 = vld [vmem:[%s284 + $0x58] sm:$0xff]
    %v297 = vld [vmem:[%s284 + $0x60] sm:$0xff]
    %v298 = vld [vmem:[%s284 + $0x68] sm:$0xff]
    %v299 = vld [vmem:[%s284 + $0x70] sm:$0xff]
    %v300 = vld [vmem:[%s284 + $0x78] sm:$0xff]
    %v301 = vld [vmem:[%s3] sm:$0x1]
    %v302 = vld [vmem:[%s3 + $0x1] sm:$0x1]
    %v303 = vld [vmem:[%s3 + $0x2] sm:$0x1]
    %v304 = vld [vmem:[%s3 + $0x3] sm:$0x1]
    %v305 = vadd.f32 %v32, %v164
    %v306 = vadd.f32 %v33, %v267
    %v307 = vlaneseq
    %v308 = vshrl.u32 %v307, 7
    %v309 = vsub.s32 0, %v308
    %v310 = vrot.slane %v301, %v309
    %311 = vmatprep.subr.mxu0 0.0
    %312 = vmatpush1.msra.mxu0 %v268
    %313 = vmatprep.subr.mxu0 0.0
    %314 = vmatpush1.msra.mxu0 %v269
    %315 = vmatprep.subr.mxu0 0.0
    %316 = vmatpush1.msra.mxu0 %v270
    %317 = vmatprep.subr.mxu0 0.0
    %318 = vmatpush1.msra.mxu0 %v271
    %319 = vmatprep.subr.mxu0 0.0
    %320 = vmatpush1.msra.mxu0 %v272
    %321 = vmatprep.subr.mxu0 0.0
    %322 = vmatpush1.msra.mxu0 %v273
    %323 = vmatprep.subr.mxu0 0.0
    %324 = vmatpush1.msra.mxu0 %v274
    %325 = vmatprep.subr.mxu0 0.0
    %326 = vmatpush1.msra.mxu0 %v275
    %327 = vmatprep.subr.mxu0 0.0
    %328 = vmatpush1.msra.mxu0 %v276
    %329 = vmatprep.subr.mxu0 0.0
    %330 = vmatpush1.msra.mxu0 %v277
    %331 = vmatprep.subr.mxu0 0.0
    %332 = vmatpush1.msra.mxu0 %v278
    %333 = vmatprep.subr.mxu0 0.0
    %334 = vmatpush1.msra.mxu0 %v279
    %335 = vmatprep.subr.mxu0 0.0
    %336 = vmatpush1.msra.mxu0 %v280
    %337 = vmatprep.subr.mxu0 0.0
    %338 = vmatpush1.msra.mxu0 %v281
    %339 = vmatprep.subr.mxu0 0.0
    %340 = vmatpush1.msra.mxu0 %v282
    %341 = vmatprep.subr.mxu0 0.0
    %342 = vmatpush1.msra.mxu0 %v283
    %343 = vmatprep.subr.mxu0 0.0
    %344 = vmatpush1.msra.mxu0 0.0
    %345 = vmatprep.subr.mxu0 0.0
    %346 = vmatpush1.msra.mxu0 0.0
    %347 = vmatprep.subr.mxu0 0.0
    %348 = vmatpush1.msra.mxu0 0.0
    %349 = vmatprep.subr.mxu0 0.0
    %350 = vmatpush1.msra.mxu0 0.0
    %351 = vmatprep.subr.mxu0 0.0
    %352 = vmatpush1.msra.mxu0 0.0
    %353 = vmatprep.subr.mxu0 0.0
    %354 = vmatpush1.msra.mxu0 0.0
    %355 = vmatprep.subr.mxu0 0.0
    %356 = vmatpush1.msra.mxu0 0.0
    %357 = vmatprep.subr.mxu0 0.0
    %358 = vmatpush1.msra.mxu0 0.0
    %359 = vmatprep.subr.mxu0 0.0
    %360 = vmatpush1.msra.mxu0 0.0
    %361 = vmatprep.subr.mxu0 0.0
    %362 = vmatpush1.msra.mxu0 0.0
    %363 = vmatprep.subr.mxu0 0.0
    %364 = vmatpush1.msra.mxu0 0.0
    %365 = vmatprep.subr.mxu0 0.0
    %366 = vmatpush1.msra.mxu0 0.0
    %367 = vmatprep.subr.mxu0 0.0
    %368 = vmatpush1.msra.mxu0 0.0
    %369 = vmatprep.subr.mxu0 0.0
    %370 = vmatpush1.msra.mxu0 0.0
    %371 = vmatprep.subr.mxu0 0.0
    %372 = vmatpush1.msra.mxu0 0.0
    %373 = vmatprep.subr.mxu0 0.0
    %374 = vmatpush1.msra.mxu0 0.0
    %375 = vmatprep.mubr.f32.mxu0 0.0
    %376 = vmatmul.mubr.f32.gmra.mrb[0].mxu0 %v305
    %v377 = vpop.f32.mrb[0].mxu0
    %v378 = vadd.f32 %v310, %v377
    %v379 = vpop.f32.mrb[0].mxu0
    %380 = vmatprep.mubr.f32.mxu0 0.0
    %381 = vmatmul.mubr.f32.gmra.mrb[0].mxu0 %v306
    %v382 = vpop.f32.mrb[0].mxu0
    %v383 = vadd.f32 %v310, %v382
    %v384 = vpop.f32.mrb[0].mxu0
    %385 = vdwg.mxu0
    %v386 = vmul.f32 %v378, 0.5
    %v387 = vmul.f32 %v383, 0.5
    %v388 = vmul.f32 %v378, 0.70710677
    %v389 = vmul.f32 %v383, 0.70710677
    %v390 = verf.f32.pop %v388
    %v391 = verf.f32.pop %v389
    %v392 = vadd.f32 %v390, 1.0
    %v393 = vadd.f32 %v391, 1.0
    %v394 = vmul.f32 %v386, %v392
    %v395 = vmul.f32 %v387, %v393
    %v396 = vlaneseq
    %v397 = vshrl.u32 %v396, 7
    %v398 = vsub.s32 0, %v397
    %v399 = vrot.slane %v302, %v398
    %400 = vmatprep.subr.mxu0 0.0
    %401 = vmatpush1.msra.mxu0 %v285
    %402 = vmatprep.subr.mxu0 0.0
    %403 = vmatpush1.msra.mxu0 %v286
    %404 = vmatprep.subr.mxu0 0.0
    %405 = vmatpush1.msra.mxu0 %v287
    %406 = vmatprep.subr.mxu0 0.0
    %407 = vmatpush1.msra.mxu0 %v288
    %408 = vmatprep.subr.mxu0 0.0
    %409 = vmatpush1.msra.mxu0 %v289
    %410 = vmatprep.subr.mxu0 0.0
    %411 = vmatpush1.msra.mxu0 %v290
    %412 = vmatprep.subr.mxu0 0.0
    %413 = vmatpush1.msra.mxu0 %v291
    %414 = vmatprep.subr.mxu0 0.0
    %415 = vmatpush1.msra.mxu0 %v292
    %416 = vmatprep.subr.mxu0 0.0
    %417 = vmatpush1.msra.mxu0 %v293
    %418 = vmatprep.subr.mxu0 0.0
    %419 = vmatpush1.msra.mxu0 %v294
    %420 = vmatprep.subr.mxu0 0.0
    %421 = vmatpush1.msra.mxu0 %v295
    %422 = vmatprep.subr.mxu0 0.0
    %423 = vmatpush1.msra.mxu0 %v296
    %424 = vmatprep.subr.mxu0 0.0
    %425 = vmatpush1.msra.mxu0 %v297
    %426 = vmatprep.subr.mxu0 0.0
    %427 = vmatpush1.msra.mxu0 %v298
    %428 = vmatprep.subr.mxu0 0.0
    %429 = vmatpush1.msra.mxu0 %v299
    %430 = vmatprep.subr.mxu0 0.0
    %431 = vmatpush1.msra.mxu0 %v300
    %432 = vmatprep.subr.mxu0 0.0
    %433 = vmatpush1.msra.mxu0 0.0
    %434 = vmatprep.subr.mxu0 0.0
    %435 = vmatpush1.msra.mxu0 0.0
    %436 = vmatprep.subr.mxu0 0.0
    %437 = vmatpush1.msra.mxu0 0.0
    %438 = vmatprep.subr.mxu0 0.0
    %439 = vmatpush1.msra.mxu0 0.0
    %440 = vmatprep.subr.mxu0 0.0
    %441 = vmatpush1.msra.mxu0 0.0
    %442 = vmatprep.subr.mxu0 0.0
    %443 = vmatpush1.msra.mxu0 0.0
    %444 = vmatprep.subr.mxu0 0.0
    %445 = vmatpush1.msra.mxu0 0.0
    %446 = vmatprep.subr.mxu0 0.0
    %447 = vmatpush1.msra.mxu0 0.0
    %448 = vmatprep.subr.mxu0 0.0
    %449 = vmatpush1.msra.mxu0 0.0
    %450 = vmatprep.subr.mxu0 0.0
    %451 = vmatpush1.msra.mxu0 0.0
    %452 = vmatprep.subr.mxu0 0.0
    %453 = vmatpush1.msra.mxu0 0.0
    %454 = vmatprep.subr.mxu0 0.0
    %455 = vmatpush1.msra.mxu0 0.0
    %456 = vmatprep.subr.mxu0 0.0
    %457 = vmatpush1.msra.mxu0 0.0
    %458 = vmatprep.subr.mxu0 0.0
    %459 = vmatpush1.msra.mxu0 0.0
    %460 = vmatprep.subr.mxu0 0.0
    %461 = vmatpush1.msra.mxu0 0.0
    %462 = vmatprep.subr.mxu0 0.0
    %463 = vmatpush1.msra.mxu0 0.0
    %464 = vmatprep.mubr.f32.mxu0 0.0
    %465 = vmatmul.mubr.f32.gmra.mrb[0].mxu0 %v394
    %v466 = vpop.f32.mrb[0].mxu0
    %v467 = vadd.f32 %v399, %v466
    %v468 = vpop.f32.mrb[0].mxu0
    %469 = vmatprep.mubr.f32.mxu0 0.0
    %470 = vmatmul.mubr.f32.gmra.mrb[0].mxu0 %v395
    %v471 = vpop.f32.mrb[0].mxu0
    %v472 = vadd.f32 %v399, %v471
    %v473 = vpop.f32.mrb[0].mxu0
    %474 = vdwg.mxu0
    %v475 = vadd.f32 %v32, %v467
    %v476 = vadd.f32 %v33, %v472
    %477 = vadd.xlane.f32.xlu0 %v475
    %v478 = vpop.xlane.xlu0 %477
    %479 = vadd.xlane.f32.xlu0 %v476
    %v480 = vpop.xlane.xlu0 %479
    %v481 = vrcp.pop 128.0
    %v482 = vmul.f32 %v478, %v481
    %v483 = vmul.f32 %v480, %v481
    %v484 = vsub.f32 %v475, %v482
    %v485 = vsub.f32 %v476, %v483
    %v486 = vmul.f32 %v484, %v484
    %v487 = vmul.f32 %v485, %v485
    %488 = vadd.xlane.f32.xlu0 %v486
    %v489 = vpop.xlane.xlu0 %488
    %490 = vadd.xlane.f32.xlu0 %v487
    %v491 = vpop.xlane.xlu0 %490
    %v492 = vmul.f32 %v489, %v481
    %v493 = vmul.f32 %v491, %v481
    %v494 = vadd.f32 %v492, 1e-05
    %v495 = vadd.f32 %v493, 1e-05
    %v496 = vrsqrt.pop %v494
    %v497 = vrsqrt.pop %v495
    %v498 = vmul.f32 %v484, %v496
    %v499 = vmul.f32 %v485, %v497
    %v500 = vlaneseq
    %v501 = vshrl.u32 %v500, 7
    %v502 = vsub.s32 0, %v501
    %v503 = vrot.slane %v303, %v502
    %v504 = vmul.f32 %v498, %v503
    %v505 = vmul.f32 %v499, %v503
    %v506 = vlaneseq
    %v507 = vshrl.u32 %v506, 7
    %v508 = vsub.s32 0, %v507
    %v509 = vrot.slane %v304, %v508
    %v510 = vadd.f32 %v504, %v509
    %v511 = vadd.f32 %v505, %v509
    %512 = vst [vmem:[#allocation5] sm:$0xff] %v510
    %513 = vst [vmem:[#allocation5 + $0x8] sm:$0xff] %v511
    // Predicated region
    $region22: #{tpu_custom_call.1} parent=1 // pred_check
      _
    $region23: #{tpu_custom_call.1} parent=1 // pred_check_branch
      %515 = sbr.rel (0) target = $region25
    $region24: #{tpu_custom_call.1} parent=1 // pred_region
      %s517 = ssub.s32 256, 256
      %518 = vsyncadd [#allocation4], %s517
      %s519 = sshll.u32 [#allocation5], 4
      %s520 = int_to_ptr.vmem [resolvable:$true] %s519
      %525 = dma.vmem_to_hbm [thread:$0]  %s520, 256, %s4, [#allocation4], 128, 128, 8
    $region25: #{tpu_custom_call.1} parent=1 // pred_fallthru
      _
    // Predicated region
    $region26: #{tpu_custom_call.1} parent=1 // pred_check
      _
    $region27: #{tpu_custom_call.1} parent=1 // pred_check_branch
      %527 = sbr.rel (0) target = $region29
    $region28: #{tpu_custom_call.1} parent=1 // pred_region
      %528 = dma.done [#allocation4], 256
    $region29: #{tpu_custom_call.1} parent=1 // pred_fallthru
      _
    %529 = vsyncpa [#allocation3], 1
    %530 = vsyncpa [#allocation4], 1

</llo_original>
